<compile_context>
chip_gen: v6e
topology: v6e:2x2x1
jax: 0.10.0
libtpu: 0.0.40
codegen_flags: <defaults>
</compile_context>

<pallas_src>
import functools

import jax
import jax.numpy as jnp
from jax.experimental import pallas as pl
from jax.experimental.pallas import tpu as pltpu

_NEG_BIG = -1e30          # disables padded output lanes inside the softmax
_LANE = 128               # TPU vreg lane width
_PALLAS_MIN_BATCH = 128   # below this, XLA fusion beats a single-tile pallas launch
_MAX_TILE_M = 1024        # keeps double-buffered tiles a few MB (v5e 16 MiB scoped-VMEM safe)
_TARGET_GRID_STEPS = 8    # >=2 keeps both v7x TCs busy; 8 gives pipelining headroom


def _round_up(x, m):
    return ((x + m - 1) // m) * m


def _fused_mlp_kernel(num_hidden, x_ref, *refs):
    """refs = (w0, b0, w1, b1, ..., w_out, b_out, o_ref).

    Weights are (in, out) bf16 and lane-dense (widths padded to 128); biases are
    f32 (1, out).  Activations never leave VMEM between layers.  The output
    layer's padded bias lanes hold -1e30 so they contribute exp(.)=0 to the
    softmax sum.
    """
    param_refs, o_ref = refs[:-1], refs[-1]
    h = x_ref[...]                                   # bf16 (tile_m, K)
    for i in range(num_hidden):
        w = param_refs[2 * i][...]                   # bf16 (K_i, N_i)
        b = param_refs[2 * i + 1][...]               # f32  (1,  N_i), broadcasts over rows
        z = jnp.dot(h, w, preferred_element_type=jnp.float32) + b
        # ReLU in f32 (v5e VPU has no bf16); feed the MXU bf16 operands.
        h = jnp.maximum(z, 0.0).astype(jnp.bfloat16)
        # TODO(synk): training-mode nn.Dropout(p) not replicated (torch RNG
        # dependent); eval-mode dropout is the identity, which is what runs here.
    w = param_refs[2 * num_hidden][...]
    b = param_refs[2 * num_hidden + 1][...]          # padded lanes hold -1e30
    z = jnp.dot(h, w, preferred_element_type=jnp.float32) + b
    m = jnp.max(z, axis=-1, keepdims=True)
    shifted = z - m
    lse = jnp.log(jnp.sum(jnp.exp(shifted), axis=-1, keepdims=True))
    o_ref[...] = (shifted - lse).astype(o_ref.dtype)


def _fused_mlp(x, hidden_params, out_w, out_b, *, tile_m, out_dtype):
    M, K = x.shape
    n_out = out_w.shape[1]
    num_hidden = len(hidden_params)

    flat_params = []
    in_specs = [pl.BlockSpec((tile_m, K), lambda i: (i, 0))]
    for (w, b) in hidden_params:
        flat_params += [w, b]
        # Constant block index -> fetched once, VMEM-resident for the whole grid.
        in_specs += [pl.BlockSpec(w.shape, lambda i: (0, 0)),
                     pl.BlockSpec(b.shape, lambda i: (0, 0))]
    flat_params += [out_w, out_b]
    in_specs += [pl.BlockSpec(out_w.shape, lambda i: (0, 0)),
                 pl.BlockSpec(out_b.shape, lambda i: (0, 0))]

    return pl.pallas_call(
        functools.partial(_fused_mlp_kernel, num_hidden),
        out_shape=jax.ShapeDtypeStruct((M, n_out), out_dtype),
        grid=(M // tile_m,),
        in_specs=in_specs,
        out_specs=pl.BlockSpec((tile_m, n_out), lambda i: (i, 0)),
        compiler_params=pltpu.CompilerParams(
            dimension_semantics=("parallel",)),
    )(x, *flat_params)


def init_params(key, input_size, output_size, hidden_layers):
    """nn.Linear-style init, stored kernel-ready:

    - weights pre-transposed to (in, out) and cast to bf16,
    - biases stored f32 as (1, out),
    - every layer width padded to a lane-dense multiple of 128:
        hidden layers: padded weight cols / bias lanes are 0 (ReLU(0)=0 and the
        next layer's padded weight rows are 0, so padding is numerically exact),
        output layer: padded weight cols are 0, padded bias lanes are -1e30 so
        log_softmax ignores them.
    """
    widths = [input_size] + [_round_up(h, _LANE) for h in hidden_layers]
    params = {"hidden": [], "output": None}
    for h, real_out in enumerate(hidden_layers):
        key, kw, kb = jax.random.split(key, 3)
        real_in = input_size if h == 0 else hidden_layers[h - 1]
        bound = 1.0 / (real_in ** 0.5)
        w = jax.random.uniform(kw, (real_in, real_out), jnp.float32, -bound, bound)
        b = jax.random.uniform(kb, (1, real_out), jnp.float32, -bound, bound)
        w_pad = jnp.zeros((widths[h], widths[h + 1]), jnp.float32)
        w_pad = w_pad.at[:real_in, :real_out].set(w)
        b_pad = jnp.zeros((1, widths[h + 1]), jnp.float32).at[:, :real_out].set(b)
        params["hidden"].append((w_pad.astype(jnp.bfloat16), b_pad))

    key, kw, kb = jax.random.split(key, 3)
    real_in = hidden_layers[-1]
    bound = 1.0 / (real_in ** 0.5)
    n_pad = _round_up(output_size, _LANE)
    w = jax.random.uniform(kw, (real_in, output_size), jnp.float32, -bound, bound)
    b = jax.random.uniform(kb, (1, output_size), jnp.float32, -bound, bound)
    w_pad = jnp.zeros((widths[-1], n_pad), jnp.float32).at[:real_in, :output_size].set(w)
    b_pad = jnp.full((1, n_pad), _NEG_BIG, jnp.float32).at[:, :output_size].set(b)
    params["output"] = (w_pad.astype(jnp.bfloat16), b_pad)
    return params


def _forward_jax(x, params, output_size):
    """Pure-JAX forward with the exact same math (also the tiny-batch path)."""
    h = x.astype(jnp.float32)
    for (w, b) in params["hidden"]:
        z = jnp.dot(h.astype(jnp.bfloat16), w, preferred_element_type=jnp.float32) + b
        h = jnp.maximum(z, 0.0)
    w, b = params["output"]
    z = jnp.dot(h.astype(jnp.bfloat16), w, preferred_element_type=jnp.float32) + b
    return jax.nn.log_softmax(z, axis=-1)[:, :output_size]


def _pick_tile_m(m):
    # Aim for >= _TARGET_GRID_STEPS grid steps (keeps both v7x TensorCores fed
    # and the DMA pipeline busy), multiple of 128, capped for v5e VMEM safety.
    t = _round_up(pl.cdiv(_round_up(m, 8), _TARGET_GRID_STEPS), _LANE)
    return max(_LANE, min(_MAX_TILE_M, t))


@functools.partial(jax.jit, static_argnames=("output_size", "out_dtype"))
def my_network_forward(x, params, *, output_size, out_dtype=jnp.float32):
    """Forward pass equivalent to MyNetwork.forward (eval-mode dropout)."""
    x = x.astype(jnp.float32)
    M = x.shape[0]
    if M < _PALLAS_MIN_BATCH:
        # Single-tile regime: pallas_call launch overhead dominates; let XLA fuse it.
        return _forward_jax(x, params, output_size).astype(out_dtype)
    tile_m = _pick_tile_m(M)
    m_pad = _round_up(M, tile_m)
    if m_pad != M:
        x = jnp.pad(x, ((0, m_pad - M), (0, 0)))
    # bf16 input halves the x-tile DMA bytes; matmuls still accumulate in f32.
    out = _fused_mlp(x.astype(jnp.bfloat16), params["hidden"], *params["output"],
                     tile_m=tile_m, out_dtype=out_dtype)
    return out[:M, :output_size]


if __name__ == "__main__":
    input_size = 64
    hidden_layers = [128, 64]
    output_size = 10

    key = jax.random.PRNGKey(0)
    key, kp = jax.random.split(key)
    params = init_params(kp, input_size, output_size, hidden_layers)

    # --- Pallas path: batch large enough to tile the grid (2 grid steps) ---
    key, kx = jax.random.split(key)
    x_big = jax.random.normal(kx, (256, input_size), dtype=jnp.float32)
    out_big = jax.block_until_ready(
        my_network_forward(x_big, params, output_size=output_size))
    assert out_big.shape == (256, output_size)
    row_sums = jnp.exp(out_big).sum(axis=1)
    assert jnp.allclose(row_sums, jnp.ones_like(row_sums), atol=1e-4)
    ref_big = _forward_jax(x_big, params, output_size)
    assert jnp.allclose(out_big, ref_big, atol=1e-4, rtol=1e-4), (
        float(jnp.max(jnp.abs(out_big - ref_big))))

    # --- tiny-batch path (dispatches to fused XLA; same math) ---
    key, kx = jax.random.split(key)
    x_small = jax.random.normal(kx, (8, input_size), dtype=jnp.float32)
    out_small = jax.block_until_ready(
        my_network_forward(x_small, params, output_size=output_size))
    assert out_small.shape == (8, output_size)
    ref_small = _forward_jax(x_small, params, output_size)
    assert jnp.allclose(out_small, ref_small, atol=1e-5, rtol=1e-5)

    print("KERNEL_OK")
</pallas_src>

<mosaic_0001>
module attributes {stable_mosaic.version = 11 : i64} {
  func.func @_fused_mlp_kernel(%arg0: i32, %arg1: memref<128x64xbf16, #tpu.memory_space<vmem>>, %arg2: memref<64x128xbf16, #tpu.memory_space<vmem>>, %arg3: memref<1x128xf32, #tpu.memory_space<vmem>>, %arg4: memref<128x128xbf16, #tpu.memory_space<vmem>>, %arg5: memref<1x128xf32, #tpu.memory_space<vmem>>, %arg6: memref<128x128xbf16, #tpu.memory_space<vmem>>, %arg7: memref<1x128xf32, #tpu.memory_space<vmem>>, %arg8: memref<128x128xf32, #tpu.memory_space<vmem>>) attributes {dimension_semantics = [#tpu.dimension_semantics<parallel>], iteration_bounds = array<i64: 2>, scalar_prefetch = 0 : i64, scratch_operands = 0 : i64, tpu.core_type = #tpu.core_type<tc>, window_params = [{transform_indices = @transform_0, window_bounds = array<i64: 128, 64>}, {pipeline_mode = #tpu.pipeline_mode<synchronous>, transform_indices = @transform_1, window_bounds = array<i64: 64, 128>}, {pipeline_mode = #tpu.pipeline_mode<synchronous>, transform_indices = @transform_2, window_bounds = array<i64: 1, 128>}, {pipeline_mode = #tpu.pipeline_mode<synchronous>, transform_indices = @transform_3, window_bounds = array<i64: 128, 128>}, {pipeline_mode = #tpu.pipeline_mode<synchronous>, transform_indices = @transform_4, window_bounds = array<i64: 1, 128>}, {pipeline_mode = #tpu.pipeline_mode<synchronous>, transform_indices = @transform_5, window_bounds = array<i64: 128, 128>}, {pipeline_mode = #tpu.pipeline_mode<synchronous>, transform_indices = @transform_6, window_bounds = array<i64: 1, 128>}, {transform_indices = @transform_7, window_bounds = array<i64: 128, 128>}]} {
    %c0 = arith.constant 0 : index
    %c0_0 = arith.constant 0 : index
    %0 = vector.load %arg1[%c0, %c0_0] : memref<128x64xbf16, #tpu.memory_space<vmem>>, vector<128x64xbf16>
    %c0_1 = arith.constant 0 : index
    %c0_2 = arith.constant 0 : index
    %1 = vector.load %arg2[%c0_1, %c0_2] : memref<64x128xbf16, #tpu.memory_space<vmem>>, vector<64x128xbf16>
    %c0_3 = arith.constant 0 : index
    %c0_4 = arith.constant 0 : index
    %2 = vector.load %arg3[%c0_3, %c0_4] : memref<1x128xf32, #tpu.memory_space<vmem>>, vector<1x128xf32>
    %cst = arith.constant dense<0.000000e+00> : vector<128x128xf32>
    %3 = tpu.matmul %0, %1, %cst {dimension_numbers = #tpu.dot_dimension_numbers<[1], [0], [0], [1], [0, 0, 1, 1], [], []>} : vector<128x64xbf16>, vector<64x128xbf16>, vector<128x128xf32> -> vector<128x128xf32>
    %4 = vector.broadcast %2 : vector<1x128xf32> to vector<128x128xf32>
    %5 = arith.addf %3, %4 : vector<128x128xf32>
    %cst_5 = arith.constant 0.000000e+00 : f32
    %6 = vector.broadcast %cst_5 : f32 to vector<128x128xf32>
    %7 = arith.maximumf %5, %6 : vector<128x128xf32>
    %8 = arith.truncf %7 : vector<128x128xf32> to vector<128x128xbf16>
    %c0_6 = arith.constant 0 : index
    %c0_7 = arith.constant 0 : index
    %9 = vector.load %arg4[%c0_6, %c0_7] : memref<128x128xbf16, #tpu.memory_space<vmem>>, vector<128x128xbf16>
    %c0_8 = arith.constant 0 : index
    %c0_9 = arith.constant 0 : index
    %10 = vector.load %arg5[%c0_8, %c0_9] : memref<1x128xf32, #tpu.memory_space<vmem>>, vector<1x128xf32>
    %cst_10 = arith.constant dense<0.000000e+00> : vector<128x128xf32>
    %11 = tpu.matmul %8, %9, %cst_10 {dimension_numbers = #tpu.dot_dimension_numbers<[1], [0], [0], [1], [0, 0, 1, 1], [], []>} : vector<128x128xbf16>, vector<128x128xbf16>, vector<128x128xf32> -> vector<128x128xf32>
    %12 = vector.broadcast %10 : vector<1x128xf32> to vector<128x128xf32>
    %13 = arith.addf %11, %12 : vector<128x128xf32>
    %cst_11 = arith.constant 0.000000e+00 : f32
    %14 = vector.broadcast %cst_11 : f32 to vector<128x128xf32>
    %15 = arith.maximumf %13, %14 : vector<128x128xf32>
    %16 = arith.truncf %15 : vector<128x128xf32> to vector<128x128xbf16>
    %c0_12 = arith.constant 0 : index
    %c0_13 = arith.constant 0 : index
    %17 = vector.load %arg6[%c0_12, %c0_13] : memref<128x128xbf16, #tpu.memory_space<vmem>>, vector<128x128xbf16>
    %c0_14 = arith.constant 0 : index
    %c0_15 = arith.constant 0 : index
    %18 = vector.load %arg7[%c0_14, %c0_15] : memref<1x128xf32, #tpu.memory_space<vmem>>, vector<1x128xf32>
    %cst_16 = arith.constant dense<0.000000e+00> : vector<128x128xf32>
    %19 = tpu.matmul %16, %17, %cst_16 {dimension_numbers = #tpu.dot_dimension_numbers<[1], [0], [0], [1], [0, 0, 1, 1], [], []>} : vector<128x128xbf16>, vector<128x128xbf16>, vector<128x128xf32> -> vector<128x128xf32>
    %20 = vector.broadcast %18 : vector<1x128xf32> to vector<128x128xf32>
    %21 = arith.addf %19, %20 : vector<128x128xf32>
    %cst_17 = arith.constant dense<0xFF800000> : vector<128xf32>
    %22 = vector.multi_reduction <maximumf>, %21, %cst_17 [1] : vector<128x128xf32> to vector<128xf32>
    %23 = vector.shape_cast %22 : vector<128xf32> to vector<128x1xf32>
    %24 = vector.broadcast %23 : vector<128x1xf32> to vector<128x128xf32>
    %25 = arith.subf %21, %24 : vector<128x128xf32>
    %26 = math.exp %25 : vector<128x128xf32>
    %cst_18 = arith.constant dense<0.000000e+00> : vector<128xf32>
    %27 = vector.multi_reduction <add>, %26, %cst_18 [1] : vector<128x128xf32> to vector<128xf32>
    %28 = vector.shape_cast %27 : vector<128xf32> to vector<128x1xf32>
    %29 = math.log %28 : vector<128x1xf32>
    %30 = vector.broadcast %29 : vector<128x1xf32> to vector<128x128xf32>
    %31 = arith.subf %25, %30 : vector<128x128xf32>
    %c0_19 = arith.constant 0 : index
    %c0_20 = arith.constant 0 : index
    %32 = vector.load %arg8[%c0_19, %c0_20] : memref<128x128xf32, #tpu.memory_space<vmem>>, vector<128x128xf32>
    tpu.vector_store %arg8[%c0_19, %c0_20], %31 {strides = array<i32>} : memref<128x128xf32, #tpu.memory_space<vmem>>, vector<128x128xf32>,
    return
  }
  func.func @transform_0(%arg0: i32) -> (i32, i32) {
    %c0_i32 = arith.constant 0 : i32
    %c0_i32_0 = arith.constant 0 : i32
    return %arg0, %c0_i32 : i32, i32
  }
  func.func @transform_1(%arg0: i32) -> (i32, i32) {
    %c0_i32 = arith.constant 0 : i32
    %c0_i32_0 = arith.constant 0 : i32
    %c0_i32_1 = arith.constant 0 : i32
    return %c0_i32, %c0_i32_0 : i32, i32
  }
  func.func @transform_2(%arg0: i32) -> (i32, i32) {
    %c0_i32 = arith.constant 0 : i32
    %c0_i32_0 = arith.constant 0 : i32
    %c0_i32_1 = arith.constant 0 : i32
    return %c0_i32, %c0_i32_0 : i32, i32
  }
  func.func @transform_3(%arg0: i32) -> (i32, i32) {
    %c0_i32 = arith.constant 0 : i32
    %c0_i32_0 = arith.constant 0 : i32
    %c0_i32_1 = arith.constant 0 : i32
    return %c0_i32, %c0_i32_0 : i32, i32
  }
  func.func @transform_4(%arg0: i32) -> (i32, i32) {
    %c0_i32 = arith.constant 0 : i32
    %c0_i32_0 = arith.constant 0 : i32
    %c0_i32_1 = arith.constant 0 : i32
    return %c0_i32, %c0_i32_0 : i32, i32
  }
  func.func @transform_5(%arg0: i32) -> (i32, i32) {
    %c0_i32 = arith.constant 0 : i32
    %c0_i32_0 = arith.constant 0 : i32
    %c0_i32_1 = arith.constant 0 : i32
    return %c0_i32, %c0_i32_0 : i32, i32
  }
  func.func @transform_6(%arg0: i32) -> (i32, i32) {
    %c0_i32 = arith.constant 0 : i32
    %c0_i32_0 = arith.constant 0 : i32
    %c0_i32_1 = arith.constant 0 : i32
    return %c0_i32, %c0_i32_0 : i32, i32
  }
  func.func @transform_7(%arg0: i32) -> (i32, i32) {
    %c0_i32 = arith.constant 0 : i32
    %c0_i32_0 = arith.constant 0 : i32
    return %arg0, %c0_i32 : i32, i32
  }
}

</mosaic_0001>

<llo_original>
// kernel: my_network_forward.1
$region0: #{my_network_forward.1}
  #allocation0 [shape = 'u32[]', space=smem, size = 0x4, offset = 0x4, fixed_abs, tag = 'smem constant byte address 0x4 - core index']
  #allocation1 [shape = 'u32[144,128]{1,0:T(1,128)}', space=vmem, size = 0x12000, scoped, tag = 'internal scratch']
  %s0 = inlined_call_operand.vmem [shape: bf16[256,64], index: 0, kind: input, shape index: {}]
  %s1 = inlined_call_operand.vmem [shape: bf16[64,128], index: 1, kind: input, shape index: {}]
  %s2 = inlined_call_operand.vmem [shape: f32[1,128], index: 2, kind: input, shape index: {}]
  %s3 = inlined_call_operand.vmem [shape: bf16[128,128], index: 3, kind: input, shape index: {}]
  %s4 = inlined_call_operand.vmem [shape: f32[1,128], index: 4, kind: input, shape index: {}]
  %s5 = inlined_call_operand.vmem [shape: bf16[128,128], index: 5, kind: input, shape index: {}]
  %s6 = inlined_call_operand.vmem [shape: f32[1,128], index: 6, kind: input, shape index: {}]
  %s7 = inlined_call_operand.vmem [shape: f32[256,128], index: 7, kind: output, shape index: {}]
  %s8 = sld [smem:[#allocation0]]
  $region61: #{my_network_forward.1} parent=0
    _
  %s10 = ssub.s32 1, %s8
  %s11 = scalar_select 0, %s10, %s8
  loop: start=0, step=1, limit=4
  $region2: #{my_network_forward.1} parent=0 // loop_pre_header
    _
  $region3: #{my_network_forward.1} parent=0 // loop_header
    %s13 = sphi 0, %s17
    %p14 = scmp.ge.s32.totalorder %s13, 4
    %s23 = sphi 0, %s25
    %s26 = sphi 0, %s23
    %s27 = sphi 0, %s26
    %s43 = sphi 0, %s27
    %s47 = sphi 0, %s47
    %s49 = sphi 0, %s47
    %s50 = sphi 0, %s49
    %s64 = sphi 0, %s50
    %s68 = sphi 0, %s68
    %s70 = sphi 0, %s68
    %s71 = sphi 0, %s70
    %s85 = sphi 0, %s71
    %s89 = sphi 0, %s89
    %s91 = sphi 0, %s89
    %s92 = sphi 0, %s91
    %s106 = sphi 0, %s92
    %s110 = sphi 0, %s110
    %s112 = sphi 0, %s110
    %s113 = sphi 0, %s112
    %s127 = sphi 0, %s113
    %s131 = sphi 0, %s131
    %s133 = sphi 0, %s131
    %s134 = sphi 0, %s133
    %s148 = sphi 0, %s134
    %s152 = sphi 0, %s152
    %s154 = sphi 0, %s152
    %s155 = sphi 0, %s154
    %s169 = sphi 0, %s155
    %s175 = sphi 0, %s177
    %s178 = sphi 0, %s175
    %s179 = sphi 0, %s178
    %s195 = sphi 0, %s179
  $region4: #{my_network_forward.1} parent=0 // loop_header_branch
    %16 = sbr.rel (%p14) target = $region8
  $region5: #{my_network_forward.1} parent=0 // loop_body
    %s18 = ssub.s32 %s13, 1
    %s19 = ssub.s32 %s13, 2
    %s20 = sadd.s32 %s13, 1
    %s21 = ssub.s32 %s13, %s20
    %p22 = scmp.eq.s32.totalorder %s21, 0
    %s24 = sadd.s32 %s23, 1
    %s25 = scalar_select %p22, %s23, %s24
    %p28 = pneg %p22
    %p29 = scmp.eq.s32.totalorder %s13, 1
    %p30 = por %p28, %p29
    %p31 = scmp.ne.s32.totalorder %s23, %s26
    %p32 = scmp.eq.s32.totalorder %s13, 0
    %p33 = por %p31, %p32
    %p34 = scmp.ne.s32.totalorder %s23, %s26
    %p35 = scmp.eq.s32.totalorder %s18, 1
    %p36 = por %p34, %p35
    %p37 = scmp.ne.s32.totalorder %s26, %s27
    %p38 = scmp.eq.s32.totalorder %s18, 0
    %p39 = por %p37, %p38
    %p40 = scmp.ne.s32.totalorder %s26, %s27
    %p41 = scmp.eq.s32.totalorder %s19, 1
    %p42 = por %p40, %p41
    %p44 = scmp.ne.s32.totalorder %s27, %s43
    %p45 = scmp.eq.s32.totalorder %s19, 0
    %p46 = por %p44, %p45
    %s48 = sadd.s32 %s47, 1
    %p51 = scmp.eq.s32.totalorder %s13, 1
    %p52 = scmp.ne.s32.totalorder %s47, %s49
    %p53 = scmp.eq.s32.totalorder %s13, 0
    %p54 = por %p52, %p53
    %p55 = scmp.ne.s32.totalorder %s47, %s49
    %p56 = scmp.eq.s32.totalorder %s18, 1
    %p57 = por %p55, %p56
    %p58 = scmp.ne.s32.totalorder %s49, %s50
    %p59 = scmp.eq.s32.totalorder %s18, 0
    %p60 = por %p58, %p59
    %p61 = scmp.ne.s32.totalorder %s49, %s50
    %p62 = scmp.eq.s32.totalorder %s19, 1
    %p63 = por %p61, %p62
    %p65 = scmp.ne.s32.totalorder %s50, %s64
    %p66 = scmp.eq.s32.totalorder %s19, 0
    %p67 = por %p65, %p66
    %s69 = sadd.s32 %s68, 1
    %p72 = scmp.eq.s32.totalorder %s13, 1
    %p73 = scmp.ne.s32.totalorder %s68, %s70
    %p74 = scmp.eq.s32.totalorder %s13, 0
    %p75 = por %p73, %p74
    %p76 = scmp.ne.s32.totalorder %s68, %s70
    %p77 = scmp.eq.s32.totalorder %s18, 1
    %p78 = por %p76, %p77
    %p79 = scmp.ne.s32.totalorder %s70, %s71
    %p80 = scmp.eq.s32.totalorder %s18, 0
    %p81 = por %p79, %p80
    %p82 = scmp.ne.s32.totalorder %s70, %s71
    %p83 = scmp.eq.s32.totalorder %s19, 1
    %p84 = por %p82, %p83
    %p86 = scmp.ne.s32.totalorder %s71, %s85
    %p87 = scmp.eq.s32.totalorder %s19, 0
    %p88 = por %p86, %p87
    %s90 = sadd.s32 %s89, 1
    %p93 = scmp.eq.s32.totalorder %s13, 1
    %p94 = scmp.ne.s32.totalorder %s89, %s91
    %p95 = scmp.eq.s32.totalorder %s13, 0
    %p96 = por %p94, %p95
    %p97 = scmp.ne.s32.totalorder %s89, %s91
    %p98 = scmp.eq.s32.totalorder %s18, 1
    %p99 = por %p97, %p98
    %p100 = scmp.ne.s32.totalorder %s91, %s92
    %p101 = scmp.eq.s32.totalorder %s18, 0
    %p102 = por %p100, %p101
    %p103 = scmp.ne.s32.totalorder %s91, %s92
    %p104 = scmp.eq.s32.totalorder %s19, 1
    %p105 = por %p103, %p104
    %p107 = scmp.ne.s32.totalorder %s92, %s106
    %p108 = scmp.eq.s32.totalorder %s19, 0
    %p109 = por %p107, %p108
    %s111 = sadd.s32 %s110, 1
    %p114 = scmp.eq.s32.totalorder %s13, 1
    %p115 = scmp.ne.s32.totalorder %s110, %s112
    %p116 = scmp.eq.s32.totalorder %s13, 0
    %p117 = por %p115, %p116
    %p118 = scmp.ne.s32.totalorder %s110, %s112
    %p119 = scmp.eq.s32.totalorder %s18, 1
    %p120 = por %p118, %p119
    %p121 = scmp.ne.s32.totalorder %s112, %s113
    %p122 = scmp.eq.s32.totalorder %s18, 0
    %p123 = por %p121, %p122
    %p124 = scmp.ne.s32.totalorder %s112, %s113
    %p125 = scmp.eq.s32.totalorder %s19, 1
    %p126 = por %p124, %p125
    %p128 = scmp.ne.s32.totalorder %s113, %s127
    %p129 = scmp.eq.s32.totalorder %s19, 0
    %p130 = por %p128, %p129
    %s132 = sadd.s32 %s131, 1
    %p135 = scmp.eq.s32.totalorder %s13, 1
    %p136 = scmp.ne.s32.totalorder %s131, %s133
    %p137 = scmp.eq.s32.totalorder %s13, 0
    %p138 = por %p136, %p137
    %p139 = scmp.ne.s32.totalorder %s131, %s133
    %p140 = scmp.eq.s32.totalorder %s18, 1
    %p141 = por %p139, %p140
    %p142 = scmp.ne.s32.totalorder %s133, %s134
    %p143 = scmp.eq.s32.totalorder %s18, 0
    %p144 = por %p142, %p143
    %p145 = scmp.ne.s32.totalorder %s133, %s134
    %p146 = scmp.eq.s32.totalorder %s19, 1
    %p147 = por %p145, %p146
    %p149 = scmp.ne.s32.totalorder %s134, %s148
    %p150 = scmp.eq.s32.totalorder %s19, 0
    %p151 = por %p149, %p150
    %s153 = sadd.s32 %s152, 1
    %p156 = scmp.eq.s32.totalorder %s13, 1
    %p157 = scmp.ne.s32.totalorder %s152, %s154
    %p158 = scmp.eq.s32.totalorder %s13, 0
    %p159 = por %p157, %p158
    %p160 = scmp.ne.s32.totalorder %s152, %s154
    %p161 = scmp.eq.s32.totalorder %s18, 1
    %p162 = por %p160, %p161
    %p163 = scmp.ne.s32.totalorder %s154, %s155
    %p164 = scmp.eq.s32.totalorder %s18, 0
    %p165 = por %p163, %p164
    %p166 = scmp.ne.s32.totalorder %s154, %s155
    %p167 = scmp.eq.s32.totalorder %s19, 1
    %p168 = por %p166, %p167
    %p170 = scmp.ne.s32.totalorder %s155, %s169
    %p171 = scmp.eq.s32.totalorder %s19, 0
    %p172 = por %p170, %p171
    %s173 = ssub.s32 %s13, %s20
    %p174 = scmp.eq.s32.totalorder %s173, 0
    %s176 = sadd.s32 %s175, 1
    %s177 = scalar_select %p174, %s175, %s176
    %p180 = pneg %p174
    %p181 = scmp.eq.s32.totalorder %s13, 1
    %p182 = por %p180, %p181
    %p183 = scmp.ne.s32.totalorder %s175, %s178
    %p184 = scmp.eq.s32.totalorder %s13, 0
    %p185 = por %p183, %p184
    %p186 = scmp.ne.s32.totalorder %s175, %s178
    %p187 = scmp.eq.s32.totalorder %s18, 1
    %p188 = por %p186, %p187
    %p189 = scmp.ne.s32.totalorder %s178, %s179
    %p190 = scmp.eq.s32.totalorder %s18, 0
    %p191 = por %p189, %p190
    %p192 = scmp.ne.s32.totalorder %s178, %s179
    %p193 = scmp.eq.s32.totalorder %s19, 1
    %p194 = por %p192, %p193
    %p196 = scmp.ne.s32.totalorder %s179, %s195
    %p197 = scmp.eq.s32.totalorder %s19, 0
    %p198 = por %p196, %p197
    %p199 = scmp.le.s32.totalorder 1, %s13
    %p200 = scmp.lt.s32.totalorder %s13, 3
    %p201 = pnand %p199, %p200
    %p202 = pneg %p201
    // Predicated region
    $region9: #{my_network_forward.1} parent=5 // pred_check
      _
    $region10: #{my_network_forward.1} parent=5 // pred_check_branch
      %204 = sbr.rel (%p201) target = $region12
    $region11: #{my_network_forward.1} parent=5 // pred_region
      %s205 = ssub.s32 %s13, 1
      // Predicated region
      $region13: #{my_network_forward.1} parent=11 // pred_check
        %p206 = pneg %p60
      $region14: #{my_network_forward.1} parent=11 // pred_check_branch
        %208 = sbr.rel (%p206) target = $region16
      $region15: #{my_network_forward.1} parent=11 // pred_region
        _
      $region16: #{my_network_forward.1} parent=11 // pred_fallthru
        _
      // Predicated region
      $region17: #{my_network_forward.1} parent=11 // pred_check
        %p209 = pneg %p81
      $region18: #{my_network_forward.1} parent=11 // pred_check_branch
        %211 = sbr.rel (%p209) target = $region20
      $region19: #{my_network_forward.1} parent=11 // pred_region
        _
      $region20: #{my_network_forward.1} parent=11 // pred_fallthru
        _
      // Predicated region
      $region21: #{my_network_forward.1} parent=11 // pred_check
        %p212 = pneg %p102
      $region22: #{my_network_forward.1} parent=11 // pred_check_branch
        %214 = sbr.rel (%p212) target = $region24
      $region23: #{my_network_forward.1} parent=11 // pred_region
        _
      $region24: #{my_network_forward.1} parent=11 // pred_fallthru
        _
      // Predicated region
      $region25: #{my_network_forward.1} parent=11 // pred_check
        %p215 = pneg %p123
      $region26: #{my_network_forward.1} parent=11 // pred_check_branch
        %217 = sbr.rel (%p215) target = $region28
      $region27: #{my_network_forward.1} parent=11 // pred_region
        _
      $region28: #{my_network_forward.1} parent=11 // pred_fallthru
        _
      // Predicated region
      $region29: #{my_network_forward.1} parent=11 // pred_check
        %p218 = pneg %p144
      $region30: #{my_network_forward.1} parent=11 // pred_check_branch
        %220 = sbr.rel (%p218) target = $region32
      $region31: #{my_network_forward.1} parent=11 // pred_region
        _
      $region32: #{my_network_forward.1} parent=11 // pred_fallthru
        _
      // Predicated region
      $region33: #{my_network_forward.1} parent=11 // pred_check
        %p221 = pneg %p165
      $region34: #{my_network_forward.1} parent=11 // pred_check_branch
        %223 = sbr.rel (%p221) target = $region36
      $region35: #{my_network_forward.1} parent=11 // pred_region
        _
      $region36: #{my_network_forward.1} parent=11 // pred_fallthru
        _
    $region12: #{my_network_forward.1} parent=5 // pred_fallthru
      _
    %p224 = scmp.lt.s32.totalorder %s13, 2
    // Predicated region
    $region37: #{my_network_forward.1} parent=5 // pred_check
      %p225 = pneg %p224
    $region38: #{my_network_forward.1} parent=5 // pred_check_branch
      %227 = sbr.rel (%p225) target = $region40
    $region39: #{my_network_forward.1} parent=5 // pred_region
      // Predicated region
      $region41: #{my_network_forward.1} parent=39 // pred_check
        %p228 = pneg %p33
      $region42: #{my_network_forward.1} parent=39 // pred_check_branch
        %230 = sbr.rel (%p228) target = $region44
      $region43: #{my_network_forward.1} parent=39 // pred_region
        %s231 = smul.u32 16, %s13
        %p232 = scmp.lt.s32.totalorder %s231, 31
        %s233 = scalar_select %p232, %s231, 31
        %s234 = smul.addr %s233, 4
        %s235 = scalar_lea.vmem %s0, %s234
        %s236 = smul.u32 16, %s13
      $region44: #{my_network_forward.1} parent=39 // pred_fallthru
        _
    $region40: #{my_network_forward.1} parent=5 // pred_fallthru
      _
    %p237 = scmp.le.s32.totalorder 1, %s13
    %p238 = scmp.lt.s32.totalorder %s13, 3
    %p239 = pnand %p237, %p238
    %p240 = pneg %p239
    // Predicated region
    $region45: #{my_network_forward.1} parent=5 // pred_check
      _
    $region46: #{my_network_forward.1} parent=5 // pred_check_branch
      %242 = sbr.rel (%p239) target = $region48
    $region47: #{my_network_forward.1} parent=5 // pred_region
      %s243 = ssub.s32 %s13, 1
      %s244 = smul.u32 16, %s18
      %p245 = scmp.lt.s32.totalorder %s244, 31
      %s246 = scalar_select %p245, %s244, 31
      %s247 = smul.addr %s246, 4
      %s248 = scalar_lea.vmem %s0, %s247
      %p249 = pneg %p39
      %p250 = pneg %p36
      %p251 = pneg %p60
      %p252 = pneg %p57
      %p253 = pneg %p81
      %p254 = pneg %p78
      %p255 = pneg %p102
      %p256 = pneg %p99
      %p257 = pneg %p123
      %p258 = pneg %p120
      %p259 = pneg %p144
      %p260 = pneg %p141
      %p261 = pneg %p165
      %p262 = pneg %p162
      %p263 = pneg %p191
      %p264 = pneg %p188
      %s265 = smul.u32 16, %s18
      %p266 = scmp.lt.s32.totalorder %s265, 31
      %s267 = scalar_select %p266, %s265, 31
      %s268 = smul.addr %s267, 8
      %s269 = scalar_lea.vmem %s7, %s268
      %s270 = smul.u32 16, %s18
      %p271 = scmp.lt.s32.totalorder %s270, 31
      %s272 = scalar_select %p271, %s270, 31
      %s273 = smul.addr %s272, 4
      %s274 = scalar_lea.vmem %s0, %s273
      %s275 = smul.u32 16, %s18
      %s276 = smul.u32 16, %s18
      %p277 = scmp.lt.s32.totalorder %s276, 31
      %s278 = scalar_select %p277, %s276, 31
      %s279 = smul.addr %s278, 8
      %s280 = scalar_lea.vmem %s7, %s279
      %s281 = smul.u32 16, %s18
      %v283 = vld [vmem:[%s274] sm:$0xf]
      %v284 = vld [vmem:[%s274 + $0x4] sm:$0xf]
      %v285 = vld [vmem:[%s274 + $0x8] sm:$0xf]
      %v286 = vld [vmem:[%s274 + $0xc] sm:$0xf]
      %v287 = vld [vmem:[%s274 + $0x10] sm:$0xf]
      %v288 = vld [vmem:[%s274 + $0x14] sm:$0xf]
      %v289 = vld [vmem:[%s274 + $0x18] sm:$0xf]
      %v290 = vld [vmem:[%s274 + $0x1c] sm:$0xf]
      %v291 = vld [vmem:[%s274 + $0x20] sm:$0xf]
      %v292 = vld [vmem:[%s274 + $0x24] sm:$0xf]
      %v293 = vld [vmem:[%s274 + $0x28] sm:$0xf]
      %v294 = vld [vmem:[%s274 + $0x2c] sm:$0xf]
      %v295 = vld [vmem:[%s274 + $0x30] sm:$0xf]
      %v296 = vld [vmem:[%s274 + $0x34] sm:$0xf]
      %v297 = vld [vmem:[%s274 + $0x38] sm:$0xf]
      %v298 = vld [vmem:[%s274 + $0x3c] sm:$0xf]
      %v299 = vld [vmem:[%s1] sm:$0xf]
      %v300 = vld [vmem:[%s1 + $0x4] sm:$0xf]
      %v301 = vld [vmem:[%s1 + $0x8] sm:$0xf]
      %v302 = vld [vmem:[%s1 + $0xc] sm:$0xf]
      %v303 = vld [vmem:[%s1 + $0x10] sm:$0xf]
      %v304 = vld [vmem:[%s1 + $0x14] sm:$0xf]
      %v305 = vld [vmem:[%s1 + $0x18] sm:$0xf]
      %v306 = vld [vmem:[%s1 + $0x1c] sm:$0xf]
      %v307 = vld [vmem:[%s2] sm:$0x1]
      %v309 = vlaneseq
      %v310 = vshrl.u32 %v309, 7
      %v311 = vsub.s32 0, %v310
      %v312 = vrot.slane %v307, %v311
      %v330 = vunpack.c.l.b16 %v283
      %v331 = vunpack.c.l.b16 %v284
      %v332 = vunpack.c.l.b16 %v285
      %v333 = vunpack.c.l.b16 %v286
      %v334 = vunpack.c.l.b16 %v287
      %v335 = vunpack.c.l.b16 %v288
      %v336 = vunpack.c.l.b16 %v289
      %v337 = vunpack.c.l.b16 %v290
      %v338 = vunpack.c.l.b16 %v291
      %v339 = vunpack.c.l.b16 %v292
      %v340 = vunpack.c.l.b16 %v293
      %v341 = vunpack.c.l.b16 %v294
      %v342 = vunpack.c.l.b16 %v295
      %v343 = vunpack.c.l.b16 %v296
      %v344 = vunpack.c.l.b16 %v297
      %v345 = vunpack.c.l.b16 %v298
      %v346 = vpack.c.b16 %v331, %v330
      %v347 = vpack.c.b16 %v333, %v332
      %v348 = vpack.c.b16 %v335, %v334
      %v349 = vpack.c.b16 %v337, %v336
      %v350 = vpack.c.b16 %v339, %v338
      %v351 = vpack.c.b16 %v341, %v340
      %v352 = vpack.c.b16 %v343, %v342
      %v353 = vpack.c.b16 %v345, %v344
      %v362 = vunpack.c.l.b16 %v299
      %v363 = vunpack.c.l.b16 %v300
      %v364 = vunpack.c.l.b16 %v301
      %v365 = vunpack.c.l.b16 %v302
      %v366 = vunpack.c.l.b16 %v303
      %v367 = vunpack.c.l.b16 %v304
      %v368 = vunpack.c.l.b16 %v305
      %v369 = vunpack.c.l.b16 %v306
      %v370 = vpack.c.b16 %v363, %v362
      %v371 = vpack.c.b16 %v365, %v364
      %v372 = vpack.c.b16 %v367, %v366
      %v373 = vpack.c.b16 %v369, %v368
      %vm378 = vcmask 523264
      %v380 = vsel %vm378, %v346, 0
      %v383 = vsel %vm378, %v347, 0
      %v386 = vsel %vm378, %v348, 0
      %v389 = vsel %vm378, %v349, 0
      %v392 = vsel %vm378, %v350, 0
      %v395 = vsel %vm378, %v351, 0
      %v398 = vsel %vm378, %v352, 0
      %v401 = vsel %vm378, %v353, 0
      %403 = vmatprep.subr.bf16.mxu0 0
      %404 = vmatpush1.bf16.msra.mxu0 0
      %405 = vmatprep.subr.bf16.mxu0 0
      %406 = vmatpush1.bf16.msra.mxu0 0
      %407 = vmatprep.subr.bf16.mxu0 0
      %408 = vmatpush1.bf16.msra.mxu0 0
      %409 = vmatprep.subr.bf16.mxu0 0
      %410 = vmatpush1.bf16.msra.mxu0 0
      %411 = vmatprep.subr.bf16.mxu0 0
      %412 = vmatpush1.bf16.msra.mxu0 %v373
      %413 = vmatprep.subr.bf16.mxu0 0
      %414 = vmatpush1.bf16.msra.mxu0 %v372
      %415 = vmatprep.subr.bf16.mxu0 0
      %416 = vmatpush1.bf16.msra.mxu0 %v371
      %417 = vmatprep.subr.bf16.mxu0 0
      %418 = vmatpush1.bf16.msra.mxu0 %v370
      %419 = vmatprep.subr.bf16.mxu0 0
      %420 = vmatpush2.bf16.msra.mxu0 0
      %421 = vmatprep.subr.bf16.mxu0 0
      %422 = vmatpush2.bf16.msra.mxu0 0
      %423 = vmatprep.subr.bf16.mxu0 0
      %424 = vmatpush2.bf16.msra.mxu0 0
      %425 = vmatprep.subr.bf16.mxu0 0
      %426 = vmatpush2.bf16.msra.mxu0 0
      %427 = vmatprep.subr.bf16.mxu0 0
      %428 = vmatpush2.bf16.msra.mxu0 0
      %429 = vmatprep.subr.bf16.mxu0 0
      %430 = vmatpush2.bf16.msra.mxu0 0
      %431 = vmatprep.subr.bf16.mxu0 0
      %432 = vmatpush2.bf16.msra.mxu0 0
      %433 = vmatprep.subr.bf16.mxu0 0
      %434 = vmatpush2.bf16.msra.mxu0 0
      %435 = vmatprep.mubr.bf16.mxu0 0
      %436 = vmatmul.mubr.bf16.gmra.mxu0 %v380
      %v437 = vpop.f32.mrf.mxu0
      %v438 = vadd.f32 %v312, %v437
      %v439 = vpop.f32.mrf.mxu0
      %v440 = vpop.f32.mrf.mxu0
      %v441 = vadd.f32 %v312, %v440
      %v442 = vpop.f32.mrf.mxu0
      %443 = vmatprep.mubr.bf16.mxu0 0
      %444 = vmatmul.mubr.bf16.gmra.mxu0 %v383
      %v445 = vpop.f32.mrf.mxu0
      %v446 = vadd.f32 %v312, %v445
      %v447 = vpop.f32.mrf.mxu0
      %v448 = vpop.f32.mrf.mxu0
      %v449 = vadd.f32 %v312, %v448
      %v450 = vpop.f32.mrf.mxu0
      %451 = vmatprep.mubr.bf16.mxu0 0
      %452 = vmatmul.mubr.bf16.gmra.mxu0 %v386
      %v453 = vpop.f32.mrf.mxu0
      %v454 = vadd.f32 %v312, %v453
      %v455 = vpop.f32.mrf.mxu0
      %v456 = vpop.f32.mrf.mxu0
      %v457 = vadd.f32 %v312, %v456
      %v458 = vpop.f32.mrf.mxu0
      %459 = vmatprep.mubr.bf16.mxu0 0
      %460 = vmatmul.mubr.bf16.gmra.mxu0 %v389
      %v461 = vpop.f32.mrf.mxu0
      %v462 = vadd.f32 %v312, %v461
      %v463 = vpop.f32.mrf.mxu0
      %v464 = vpop.f32.mrf.mxu0
      %v465 = vadd.f32 %v312, %v464
      %v466 = vpop.f32.mrf.mxu0
      %467 = vmatprep.mubr.bf16.mxu0 0
      %468 = vmatmul.mubr.bf16.gmra.mxu0 %v392
      %v469 = vpop.f32.mrf.mxu0
      %v470 = vadd.f32 %v312, %v469
      %v471 = vpop.f32.mrf.mxu0
      %v472 = vpop.f32.mrf.mxu0
      %v473 = vadd.f32 %v312, %v472
      %v474 = vpop.f32.mrf.mxu0
      %475 = vmatprep.mubr.bf16.mxu0 0
      %476 = vmatmul.mubr.bf16.gmra.mxu0 %v395
      %v477 = vpop.f32.mrf.mxu0
      %v478 = vadd.f32 %v312, %v477
      %v479 = vpop.f32.mrf.mxu0
      %v480 = vpop.f32.mrf.mxu0
      %v481 = vadd.f32 %v312, %v480
      %v482 = vpop.f32.mrf.mxu0
      %483 = vmatprep.mubr.bf16.mxu0 0
      %484 = vmatmul.mubr.bf16.gmra.mxu0 %v398
      %v485 = vpop.f32.mrf.mxu0
      %v486 = vadd.f32 %v312, %v485
      %v487 = vpop.f32.mrf.mxu0
      %v488 = vpop.f32.mrf.mxu0
      %v489 = vadd.f32 %v312, %v488
      %v490 = vpop.f32.mrf.mxu0
      %491 = vmatprep.mubr.bf16.mxu0 0
      %492 = vmatmul.mubr.bf16.gmra.mxu0 %v401
      %v493 = vpop.f32.mrf.mxu0
      %v494 = vadd.f32 %v312, %v493
      %v495 = vpop.f32.mrf.mxu0
      %v496 = vpop.f32.mrf.mxu0
      %v497 = vadd.f32 %v312, %v496
      %v498 = vpop.f32.mrf.mxu0
      %499 = vdwg.mxu0
      %v500 = vmax.f32 %v438, 0.0
      %v501 = vmax.f32 %v441, 0.0
      %v502 = vmax.f32 %v446, 0.0
      %v503 = vmax.f32 %v449, 0.0
      %v504 = vmax.f32 %v454, 0.0
      %v505 = vmax.f32 %v457, 0.0
      %v506 = vmax.f32 %v462, 0.0
      %v507 = vmax.f32 %v465, 0.0
      %v508 = vmax.f32 %v470, 0.0
      %v509 = vmax.f32 %v473, 0.0
      %v510 = vmax.f32 %v478, 0.0
      %v511 = vmax.f32 %v481, 0.0
      %v512 = vmax.f32 %v486, 0.0
      %v513 = vmax.f32 %v489, 0.0
      %v514 = vmax.f32 %v494, 0.0
      %v515 = vmax.f32 %v497, 0.0
      %v516 = vpack.c.bf16 %v501, %v500
      %v517 = vpack.c.bf16 %v503, %v502
      %v518 = vpack.c.bf16 %v505, %v504
      %v519 = vpack.c.bf16 %v507, %v506
      %v520 = vpack.c.bf16 %v509, %v508
      %v521 = vpack.c.bf16 %v511, %v510
      %v522 = vpack.c.bf16 %v513, %v512
      %v523 = vpack.c.bf16 %v515, %v514
      %v524 = vld [vmem:[%s3] sm:$0xf]
      %v525 = vld [vmem:[%s3 + $0x4] sm:$0xf]
      %v526 = vld [vmem:[%s3 + $0x8] sm:$0xf]
      %v527 = vld [vmem:[%s3 + $0xc] sm:$0xf]
      %v528 = vld [vmem:[%s3 + $0x10] sm:$0xf]
      %v529 = vld [vmem:[%s3 + $0x14] sm:$0xf]
      %v530 = vld [vmem:[%s3 + $0x18] sm:$0xf]
      %v531 = vld [vmem:[%s3 + $0x1c] sm:$0xf]
      %v532 = vld [vmem:[%s3 + $0x20] sm:$0xf]
      %v533 = vld [vmem:[%s3 + $0x24] sm:$0xf]
      %v534 = vld [vmem:[%s3 + $0x28] sm:$0xf]
      %v535 = vld [vmem:[%s3 + $0x2c] sm:$0xf]
      %v536 = vld [vmem:[%s3 + $0x30] sm:$0xf]
      %v537 = vld [vmem:[%s3 + $0x34] sm:$0xf]
      %v538 = vld [vmem:[%s3 + $0x38] sm:$0xf]
      %v539 = vld [vmem:[%s3 + $0x3c] sm:$0xf]
      %v540 = vld [vmem:[%s4] sm:$0x1]
      %v542 = vlaneseq
      %v543 = vshrl.u32 %v542, 7
      %v544 = vsub.s32 0, %v543
      %v545 = vrot.slane %v540, %v544
      %v563 = vunpack.c.l.b16 %v524
      %v564 = vunpack.c.l.b16 %v525
      %v565 = vunpack.c.l.b16 %v526
      %v566 = vunpack.c.l.b16 %v527
      %v567 = vunpack.c.l.b16 %v528
      %v568 = vunpack.c.l.b16 %v529
      %v569 = vunpack.c.l.b16 %v530
      %v570 = vunpack.c.l.b16 %v531
      %v571 = vunpack.c.l.b16 %v532
      %v572 = vunpack.c.l.b16 %v533
      %v573 = vunpack.c.l.b16 %v534
      %v574 = vunpack.c.l.b16 %v535
      %v575 = vunpack.c.l.b16 %v536
      %v576 = vunpack.c.l.b16 %v537
      %v577 = vunpack.c.l.b16 %v538
      %v578 = vunpack.c.l.b16 %v539
      %v579 = vpack.c.b16 %v564, %v563
      %v580 = vpack.c.b16 %v566, %v565
      %v581 = vpack.c.b16 %v568, %v567
      %v582 = vpack.c.b16 %v570, %v569
      %v583 = vpack.c.b16 %v572, %v571
      %v584 = vpack.c.b16 %v574, %v573
      %v585 = vpack.c.b16 %v576, %v575
      %v586 = vpack.c.b16 %v578, %v577
      %595 = vmatprep.subr.bf16.mxu0 0
      %596 = vmatpush1.bf16.msra.mxu0 %v586
      %597 = vmatprep.subr.bf16.mxu0 0
      %598 = vmatpush1.bf16.msra.mxu0 %v585
      %599 = vmatprep.subr.bf16.mxu0 0
      %600 = vmatpush1.bf16.msra.mxu0 %v584
      %601 = vmatprep.subr.bf16.mxu0 0
      %602 = vmatpush1.bf16.msra.mxu0 %v583
      %603 = vmatprep.subr.bf16.mxu0 0
      %604 = vmatpush1.bf16.msra.mxu0 %v582
      %605 = vmatprep.subr.bf16.mxu0 0
      %606 = vmatpush1.bf16.msra.mxu0 %v581
      %607 = vmatprep.subr.bf16.mxu0 0
      %608 = vmatpush1.bf16.msra.mxu0 %v580
      %609 = vmatprep.subr.bf16.mxu0 0
      %610 = vmatpush1.bf16.msra.mxu0 %v579
      %611 = vmatprep.subr.bf16.mxu0 0
      %612 = vmatpush2.bf16.msra.mxu0 0
      %613 = vmatprep.subr.bf16.mxu0 0
      %614 = vmatpush2.bf16.msra.mxu0 0
      %615 = vmatprep.subr.bf16.mxu0 0
      %616 = vmatpush2.bf16.msra.mxu0 0
      %617 = vmatprep.subr.bf16.mxu0 0
      %618 = vmatpush2.bf16.msra.mxu0 0
      %619 = vmatprep.subr.bf16.mxu0 0
      %620 = vmatpush2.bf16.msra.mxu0 0
      %621 = vmatprep.subr.bf16.mxu0 0
      %622 = vmatpush2.bf16.msra.mxu0 0
      %623 = vmatprep.subr.bf16.mxu0 0
      %624 = vmatpush2.bf16.msra.mxu0 0
      %625 = vmatprep.subr.bf16.mxu0 0
      %626 = vmatpush2.bf16.msra.mxu0 0
      %627 = vmatprep.mubr.bf16.mxu0 0
      %628 = vmatmul.mubr.bf16.gmra.mxu0 %v516
      %v629 = vpop.f32.mrf.mxu0
      %v630 = vadd.f32 %v545, %v629
      %v631 = vpop.f32.mrf.mxu0
      %v632 = vpop.f32.mrf.mxu0
      %v633 = vadd.f32 %v545, %v632
      %v634 = vpop.f32.mrf.mxu0
      %635 = vmatprep.mubr.bf16.mxu0 0
      %636 = vmatmul.mubr.bf16.gmra.mxu0 %v517
      %v637 = vpop.f32.mrf.mxu0
      %v638 = vadd.f32 %v545, %v637
      %v639 = vpop.f32.mrf.mxu0
      %v640 = vpop.f32.mrf.mxu0
      %v641 = vadd.f32 %v545, %v640
      %v642 = vpop.f32.mrf.mxu0
      %643 = vmatprep.mubr.bf16.mxu0 0
      %644 = vmatmul.mubr.bf16.gmra.mxu0 %v518
      %v645 = vpop.f32.mrf.mxu0
      %v646 = vadd.f32 %v545, %v645
      %v647 = vpop.f32.mrf.mxu0
      %v648 = vpop.f32.mrf.mxu0
      %v649 = vadd.f32 %v545, %v648
      %v650 = vpop.f32.mrf.mxu0
      %651 = vmatprep.mubr.bf16.mxu0 0
      %652 = vmatmul.mubr.bf16.gmra.mxu0 %v519
      %v653 = vpop.f32.mrf.mxu0
      %v654 = vadd.f32 %v545, %v653
      %v655 = vpop.f32.mrf.mxu0
      %v656 = vpop.f32.mrf.mxu0
      %v657 = vadd.f32 %v545, %v656
      %v658 = vpop.f32.mrf.mxu0
      %659 = vmatprep.mubr.bf16.mxu0 0
      %660 = vmatmul.mubr.bf16.gmra.mxu0 %v520
      %v661 = vpop.f32.mrf.mxu0
      %v662 = vadd.f32 %v545, %v661
      %v663 = vpop.f32.mrf.mxu0
      %v664 = vpop.f32.mrf.mxu0
      %v665 = vadd.f32 %v545, %v664
      %v666 = vpop.f32.mrf.mxu0
      %667 = vmatprep.mubr.bf16.mxu0 0
      %668 = vmatmul.mubr.bf16.gmra.mxu0 %v521
      %v669 = vpop.f32.mrf.mxu0
      %v670 = vadd.f32 %v545, %v669
      %v671 = vpop.f32.mrf.mxu0
      %v672 = vpop.f32.mrf.mxu0
      %v673 = vadd.f32 %v545, %v672
      %v674 = vpop.f32.mrf.mxu0
      %675 = vmatprep.mubr.bf16.mxu0 0
      %676 = vmatmul.mubr.bf16.gmra.mxu0 %v522
      %v677 = vpop.f32.mrf.mxu0
      %v678 = vadd.f32 %v545, %v677
      %v679 = vpop.f32.mrf.mxu0
      %v680 = vpop.f32.mrf.mxu0
      %v681 = vadd.f32 %v545, %v680
      %v682 = vpop.f32.mrf.mxu0
      %683 = vmatprep.mubr.bf16.mxu0 0
      %684 = vmatmul.mubr.bf16.gmra.mxu0 %v523
      %v685 = vpop.f32.mrf.mxu0
      %v686 = vadd.f32 %v545, %v685
      %v687 = vpop.f32.mrf.mxu0
      %v688 = vpop.f32.mrf.mxu0
      %v689 = vadd.f32 %v545, %v688
      %v690 = vpop.f32.mrf.mxu0
      %691 = vdwg.mxu0
      %v692 = vmax.f32 %v630, 0.0
      %v693 = vmax.f32 %v633, 0.0
      %v694 = vmax.f32 %v638, 0.0
      %v695 = vmax.f32 %v641, 0.0
      %v696 = vmax.f32 %v646, 0.0
      %v697 = vmax.f32 %v649, 0.0
      %v698 = vmax.f32 %v654, 0.0
      %v699 = vmax.f32 %v657, 0.0
      %v700 = vmax.f32 %v662, 0.0
      %v701 = vmax.f32 %v665, 0.0
      %v702 = vmax.f32 %v670, 0.0
      %v703 = vmax.f32 %v673, 0.0
      %v704 = vmax.f32 %v678, 0.0
      %v705 = vmax.f32 %v681, 0.0
      %v706 = vmax.f32 %v686, 0.0
      %v707 = vmax.f32 %v689, 0.0
      %v708 = vpack.c.bf16 %v693, %v692
      %v709 = vpack.c.bf16 %v695, %v694
      %v710 = vpack.c.bf16 %v697, %v696
      %v711 = vpack.c.bf16 %v699, %v698
      %v712 = vpack.c.bf16 %v701, %v700
      %v713 = vpack.c.bf16 %v703, %v702
      %v714 = vpack.c.bf16 %v705, %v704
      %v715 = vpack.c.bf16 %v707, %v706
      %v716 = vld [vmem:[%s5] sm:$0xf]
      %v717 = vld [vmem:[%s5 + $0x4] sm:$0xf]
      %v718 = vld [vmem:[%s5 + $0x8] sm:$0xf]
      %v719 = vld [vmem:[%s5 + $0xc] sm:$0xf]
      %v720 = vld [vmem:[%s5 + $0x10] sm:$0xf]
      %v721 = vld [vmem:[%s5 + $0x14] sm:$0xf]
      %v722 = vld [vmem:[%s5 + $0x18] sm:$0xf]
      %v723 = vld [vmem:[%s5 + $0x1c] sm:$0xf]
      %v724 = vld [vmem:[%s5 + $0x20] sm:$0xf]
      %v725 = vld [vmem:[%s5 + $0x24] sm:$0xf]
      %v726 = vld [vmem:[%s5 + $0x28] sm:$0xf]
      %v727 = vld [vmem:[%s5 + $0x2c] sm:$0xf]
      %v728 = vld [vmem:[%s5 + $0x30] sm:$0xf]
      %v729 = vld [vmem:[%s5 + $0x34] sm:$0xf]
      %v730 = vld [vmem:[%s5 + $0x38] sm:$0xf]
      %v731 = vld [vmem:[%s5 + $0x3c] sm:$0xf]
      %v732 = vld [vmem:[%s6] sm:$0x1]
      %v734 = vlaneseq
      %v735 = vshrl.u32 %v734, 7
      %v736 = vsub.s32 0, %v735
      %v737 = vrot.slane %v732, %v736
      %v755 = vunpack.c.l.b16 %v716
      %v756 = vunpack.c.l.b16 %v717
      %v757 = vunpack.c.l.b16 %v718
      %v758 = vunpack.c.l.b16 %v719
      %v759 = vunpack.c.l.b16 %v720
      %v760 = vunpack.c.l.b16 %v721
      %v761 = vunpack.c.l.b16 %v722
      %v762 = vunpack.c.l.b16 %v723
      %v763 = vunpack.c.l.b16 %v724
      %v764 = vunpack.c.l.b16 %v725
      %v765 = vunpack.c.l.b16 %v726
      %v766 = vunpack.c.l.b16 %v727
      %v767 = vunpack.c.l.b16 %v728
      %v768 = vunpack.c.l.b16 %v729
      %v769 = vunpack.c.l.b16 %v730
      %v770 = vunpack.c.l.b16 %v731
      %v771 = vpack.c.b16 %v756, %v755
      %v772 = vpack.c.b16 %v758, %v757
      %v773 = vpack.c.b16 %v760, %v759
      %v774 = vpack.c.b16 %v762, %v761
      %v775 = vpack.c.b16 %v764, %v763
      %v776 = vpack.c.b16 %v766, %v765
      %v777 = vpack.c.b16 %v768, %v767
      %v778 = vpack.c.b16 %v770, %v769
      %787 = vmatprep.subr.bf16.mxu0 0
      %788 = vmatpush1.bf16.msra.mxu0 %v778
      %789 = vmatprep.subr.bf16.mxu0 0
      %790 = vmatpush1.bf16.msra.mxu0 %v777
      %791 = vmatprep.subr.bf16.mxu0 0
      %792 = vmatpush1.bf16.msra.mxu0 %v776
      %793 = vmatprep.subr.bf16.mxu0 0
      %794 = vmatpush1.bf16.msra.mxu0 %v775
      %795 = vmatprep.subr.bf16.mxu0 0
      %796 = vmatpush1.bf16.msra.mxu0 %v774
      %797 = vmatprep.subr.bf16.mxu0 0
      %798 = vmatpush1.bf16.msra.mxu0 %v773
      %799 = vmatprep.subr.bf16.mxu0 0
      %800 = vmatpush1.bf16.msra.mxu0 %v772
      %801 = vmatprep.subr.bf16.mxu0 0
      %802 = vmatpush1.bf16.msra.mxu0 %v771
      %803 = vmatprep.subr.bf16.mxu0 0
      %804 = vmatpush2.bf16.msra.mxu0 0
      %805 = vmatprep.subr.bf16.mxu0 0
      %806 = vmatpush2.bf16.msra.mxu0 0
      %807 = vmatprep.subr.bf16.mxu0 0
      %808 = vmatpush2.bf16.msra.mxu0 0
      %809 = vmatprep.subr.bf16.mxu0 0
      %810 = vmatpush2.bf16.msra.mxu0 0
      %811 = vmatprep.subr.bf16.mxu0 0
      %812 = vmatpush2.bf16.msra.mxu0 0
      %813 = vmatprep.subr.bf16.mxu0 0
      %814 = vmatpush2.bf16.msra.mxu0 0
      %815 = vmatprep.subr.bf16.mxu0 0
      %816 = vmatpush2.bf16.msra.mxu0 0
      %817 = vmatprep.subr.bf16.mxu0 0
      %818 = vmatpush2.bf16.msra.mxu0 0
      %819 = vmatprep.mubr.bf16.mxu0 0
      %820 = vmatmul.mubr.bf16.gmra.mxu0 %v708
      %v821 = vpop.f32.mrf.mxu0
      %v822 = vadd.f32 %v737, %v821
      %v823 = vpop.f32.mrf.mxu0
      %v824 = vpop.f32.mrf.mxu0
      %v825 = vadd.f32 %v737, %v824
      %v826 = vpop.f32.mrf.mxu0
      %827 = vmatprep.mubr.bf16.mxu0 0
      %828 = vmatmul.mubr.bf16.gmra.mxu0 %v709
      %v829 = vpop.f32.mrf.mxu0
      %v830 = vadd.f32 %v737, %v829
      %v831 = vpop.f32.mrf.mxu0
      %v832 = vpop.f32.mrf.mxu0
      %v833 = vadd.f32 %v737, %v832
      %v834 = vpop.f32.mrf.mxu0
      %835 = vmatprep.mubr.bf16.mxu0 0
      %836 = vmatmul.mubr.bf16.gmra.mxu0 %v710
      %v837 = vpop.f32.mrf.mxu0
      %v838 = vadd.f32 %v737, %v837
      %v839 = vpop.f32.mrf.mxu0
      %v840 = vpop.f32.mrf.mxu0
      %v841 = vadd.f32 %v737, %v840
      %v842 = vpop.f32.mrf.mxu0
      %843 = vmatprep.mubr.bf16.mxu0 0
      %844 = vmatmul.mubr.bf16.gmra.mxu0 %v711
      %v845 = vpop.f32.mrf.mxu0
      %v846 = vadd.f32 %v737, %v845
      %v847 = vpop.f32.mrf.mxu0
      %v848 = vpop.f32.mrf.mxu0
      %v849 = vadd.f32 %v737, %v848
      %v850 = vpop.f32.mrf.mxu0
      %851 = vmatprep.mubr.bf16.mxu0 0
      %852 = vmatmul.mubr.bf16.gmra.mxu0 %v712
      %v853 = vpop.f32.mrf.mxu0
      %v854 = vadd.f32 %v737, %v853
      %v855 = vpop.f32.mrf.mxu0
      %v856 = vpop.f32.mrf.mxu0
      %v857 = vadd.f32 %v737, %v856
      %v858 = vpop.f32.mrf.mxu0
      %859 = vmatprep.mubr.bf16.mxu0 0
      %860 = vmatmul.mubr.bf16.gmra.mxu0 %v713
      %v861 = vpop.f32.mrf.mxu0
      %v862 = vadd.f32 %v737, %v861
      %v863 = vpop.f32.mrf.mxu0
      %v864 = vpop.f32.mrf.mxu0
      %v865 = vadd.f32 %v737, %v864
      %v866 = vpop.f32.mrf.mxu0
      %867 = vmatprep.mubr.bf16.mxu0 0
      %868 = vmatmul.mubr.bf16.gmra.mxu0 %v714
      %v869 = vpop.f32.mrf.mxu0
      %v870 = vadd.f32 %v737, %v869
      %v871 = vpop.f32.mrf.mxu0
      %v872 = vpop.f32.mrf.mxu0
      %v873 = vadd.f32 %v737, %v872
      %v874 = vpop.f32.mrf.mxu0
      %875 = vmatprep.mubr.bf16.mxu0 0
      %876 = vmatmul.mubr.bf16.gmra.mxu0 %v715
      %v877 = vpop.f32.mrf.mxu0
      %v878 = vadd.f32 %v737, %v877
      %v879 = vpop.f32.mrf.mxu0
      %v880 = vpop.f32.mrf.mxu0
      %v881 = vadd.f32 %v737, %v880
      %v882 = vpop.f32.mrf.mxu0
      %883 = vdwg.mxu0
      %884 = vmax.xlane.f32.xlu0 %v822
      %v885 = vpop.xlane.xlu0 %884
      %886 = vmax.xlane.f32.xlu0 %v825
      %v887 = vpop.xlane.xlu0 %886
      %888 = vmax.xlane.f32.xlu0 %v830
      %v889 = vpop.xlane.xlu0 %888
      %890 = vmax.xlane.f32.xlu0 %v833
      %v891 = vpop.xlane.xlu0 %890
      %892 = vmax.xlane.f32.xlu0 %v838
      %v893 = vpop.xlane.xlu0 %892
      %894 = vmax.xlane.f32.xlu0 %v841
      %v895 = vpop.xlane.xlu0 %894
      %896 = vmax.xlane.f32.xlu0 %v846
      %v897 = vpop.xlane.xlu0 %896
      %898 = vmax.xlane.f32.xlu0 %v849
      %v899 = vpop.xlane.xlu0 %898
      %900 = vmax.xlane.f32.xlu0 %v854
      %v901 = vpop.xlane.xlu0 %900
      %902 = vmax.xlane.f32.xlu0 %v857
      %v903 = vpop.xlane.xlu0 %902
      %904 = vmax.xlane.f32.xlu0 %v862
      %v905 = vpop.xlane.xlu0 %904
      %906 = vmax.xlane.f32.xlu0 %v865
      %v907 = vpop.xlane.xlu0 %906
      %908 = vmax.xlane.f32.xlu0 %v870
      %v909 = vpop.xlane.xlu0 %908
      %910 = vmax.xlane.f32.xlu0 %v873
      %v911 = vpop.xlane.xlu0 %910
      %912 = vmax.xlane.f32.xlu0 %v878
      %v913 = vpop.xlane.xlu0 %912
      %914 = vmax.xlane.f32.xlu0 %v881
      %v915 = vpop.xlane.xlu0 %914
      %v916 = vsub.f32 %v822, %v885
      %v917 = vsub.f32 %v825, %v887
      %v918 = vsub.f32 %v830, %v889
      %v919 = vsub.f32 %v833, %v891
      %v920 = vsub.f32 %v838, %v893
      %v921 = vsub.f32 %v841, %v895
      %v922 = vsub.f32 %v846, %v897
      %v923 = vsub.f32 %v849, %v899
      %v924 = vsub.f32 %v854, %v901
      %v925 = vsub.f32 %v857, %v903
      %v926 = vsub.f32 %v862, %v905
      %v927 = vsub.f32 %v865, %v907
      %v928 = vsub.f32 %v870, %v909
      %v929 = vsub.f32 %v873, %v911
      %v930 = vsub.f32 %v878, %v913
      %v931 = vsub.f32 %v881, %v915
      %v932 = vmul.f32 %v916, 1.442695
      %v933 = vpow.pop %v932
      %v934 = vmul.f32 %v917, 1.442695
      %v935 = vpow.pop %v934
      %v936 = vmul.f32 %v918, 1.442695
      %v937 = vpow.pop %v936
      %v938 = vmul.f32 %v919, 1.442695
      %v939 = vpow.pop %v938
      %v940 = vmul.f32 %v920, 1.442695
      %v941 = vpow.pop %v940
      %v942 = vmul.f32 %v921, 1.442695
      %v943 = vpow.pop %v942
      %v944 = vmul.f32 %v922, 1.442695
      %v945 = vpow.pop %v944
      %v946 = vmul.f32 %v923, 1.442695
      %v947 = vpow.pop %v946
      %v948 = vmul.f32 %v924, 1.442695
      %v949 = vpow.pop %v948
      %v950 = vmul.f32 %v925, 1.442695
      %v951 = vpow.pop %v950
      %v952 = vmul.f32 %v926, 1.442695
      %v953 = vpow.pop %v952
      %v954 = vmul.f32 %v927, 1.442695
      %v955 = vpow.pop %v954
      %v956 = vmul.f32 %v928, 1.442695
      %v957 = vpow.pop %v956
      %v958 = vmul.f32 %v929, 1.442695
      %v959 = vpow.pop %v958
      %v960 = vmul.f32 %v930, 1.442695
      %v961 = vpow.pop %v960
      %v962 = vmul.f32 %v931, 1.442695
      %v963 = vpow.pop %v962
      %964 = vadd.xlane.f32.xlu0 %v933
      %v965 = vpop.xlane.xlu0 %964
      %966 = vadd.xlane.f32.xlu0 %v935
      %v967 = vpop.xlane.xlu0 %966
      %968 = vadd.xlane.f32.xlu0 %v937
      %v969 = vpop.xlane.xlu0 %968
      %970 = vadd.xlane.f32.xlu0 %v939
      %v971 = vpop.xlane.xlu0 %970
      %972 = vadd.xlane.f32.xlu0 %v941
      %v973 = vpop.xlane.xlu0 %972
      %974 = vadd.xlane.f32.xlu0 %v943
      %v975 = vpop.xlane.xlu0 %974
      %976 = vadd.xlane.f32.xlu0 %v945
      %v977 = vpop.xlane.xlu0 %976
      %978 = vadd.xlane.f32.xlu0 %v947
      %v979 = vpop.xlane.xlu0 %978
      %980 = vadd.xlane.f32.xlu0 %v949
      %v981 = vpop.xlane.xlu0 %980
      %982 = vadd.xlane.f32.xlu0 %v951
      %v983 = vpop.xlane.xlu0 %982
      %984 = vadd.xlane.f32.xlu0 %v953
      %v985 = vpop.xlane.xlu0 %984
      %986 = vadd.xlane.f32.xlu0 %v955
      %v987 = vpop.xlane.xlu0 %986
      %988 = vadd.xlane.f32.xlu0 %v957
      %v989 = vpop.xlane.xlu0 %988
      %990 = vadd.xlane.f32.xlu0 %v959
      %v991 = vpop.xlane.xlu0 %990
      %992 = vadd.xlane.f32.xlu0 %v961
      %v993 = vpop.xlane.xlu0 %992
      %994 = vadd.xlane.f32.xlu0 %v963
      %v995 = vpop.xlane.xlu0 %994
      %v996 = vlog2.pop %v965
      %v997 = vmul.f32 %v996, 0.6931472
      %v998 = vlog2.pop %v967
      %v999 = vmul.f32 %v998, 0.6931472
      %v1000 = vlog2.pop %v969
      %v1001 = vmul.f32 %v1000, 0.6931472
      %v1002 = vlog2.pop %v971
      %v1003 = vmul.f32 %v1002, 0.6931472
      %v1004 = vlog2.pop %v973
      %v1005 = vmul.f32 %v1004, 0.6931472
      %v1006 = vlog2.pop %v975
      %v1007 = vmul.f32 %v1006, 0.6931472
      %v1008 = vlog2.pop %v977
      %v1009 = vmul.f32 %v1008, 0.6931472
      %v1010 = vlog2.pop %v979
      %v1011 = vmul.f32 %v1010, 0.6931472
      %v1012 = vlog2.pop %v981
      %v1013 = vmul.f32 %v1012, 0.6931472
      %v1014 = vlog2.pop %v983
      %v1015 = vmul.f32 %v1014, 0.6931472
      %v1016 = vlog2.pop %v985
      %v1017 = vmul.f32 %v1016, 0.6931472
      %v1018 = vlog2.pop %v987
      %v1019 = vmul.f32 %v1018, 0.6931472
      %v1020 = vlog2.pop %v989
      %v1021 = vmul.f32 %v1020, 0.6931472
      %v1022 = vlog2.pop %v991
      %v1023 = vmul.f32 %v1022, 0.6931472
      %v1024 = vlog2.pop %v993
      %v1025 = vmul.f32 %v1024, 0.6931472
      %v1026 = vlog2.pop %v995
      %v1027 = vmul.f32 %v1026, 0.6931472
      %v1028 = vsub.f32 %v916, %v997
      %v1029 = vsub.f32 %v917, %v999
      %v1030 = vsub.f32 %v918, %v1001
      %v1031 = vsub.f32 %v919, %v1003
      %v1032 = vsub.f32 %v920, %v1005
      %v1033 = vsub.f32 %v921, %v1007
      %v1034 = vsub.f32 %v922, %v1009
      %v1035 = vsub.f32 %v923, %v1011
      %v1036 = vsub.f32 %v924, %v1013
      %v1037 = vsub.f32 %v925, %v1015
      %v1038 = vsub.f32 %v926, %v1017
      %v1039 = vsub.f32 %v927, %v1019
      %v1040 = vsub.f32 %v928, %v1021
      %v1041 = vsub.f32 %v929, %v1023
      %v1042 = vsub.f32 %v930, %v1025
      %v1043 = vsub.f32 %v931, %v1027
      %1044 = vst [vmem:[%s280] sm:$0xff] %v1028
      %1045 = vst [vmem:[%s280 + $0x8] sm:$0xff] %v1029
      %1046 = vst [vmem:[%s280 + $0x10] sm:$0xff] %v1030
      %1047 = vst [vmem:[%s280 + $0x18] sm:$0xff] %v1031
      %1048 = vst [vmem:[%s280 + $0x20] sm:$0xff] %v1032
      %1049 = vst [vmem:[%s280 + $0x28] sm:$0xff] %v1033
      %1050 = vst [vmem:[%s280 + $0x30] sm:$0xff] %v1034
      %1051 = vst [vmem:[%s280 + $0x38] sm:$0xff] %v1035
      %1052 = vst [vmem:[%s280 + $0x40] sm:$0xff] %v1036
      %1053 = vst [vmem:[%s280 + $0x48] sm:$0xff] %v1037
      %1054 = vst [vmem:[%s280 + $0x50] sm:$0xff] %v1038
      %1055 = vst [vmem:[%s280 + $0x58] sm:$0xff] %v1039
      %1056 = vst [vmem:[%s280 + $0x60] sm:$0xff] %v1040
      %1057 = vst [vmem:[%s280 + $0x68] sm:$0xff] %v1041
      %1058 = vst [vmem:[%s280 + $0x70] sm:$0xff] %v1042
      %1059 = vst [vmem:[%s280 + $0x78] sm:$0xff] %v1043
      %s1060 = smul.u32 16, %s18
      %p1061 = scmp.lt.s32.totalorder %s1060, 31
      %s1062 = scalar_select %p1061, %s1060, 31
      %s1063 = smul.addr %s1062, 8
      %s1064 = scalar_lea.vmem %s7, %s1063
      // Predicated region
      $region49: #{my_network_forward.1} parent=47 // pred_check
        %p1065 = pneg %p188
      $region50: #{my_network_forward.1} parent=47 // pred_check_branch
        %1067 = sbr.rel (%p1065) target = $region52
      $region51: #{my_network_forward.1} parent=47 // pred_region
        %s1068 = smul.u32 16, %s18
      $region52: #{my_network_forward.1} parent=47 // pred_fallthru
        _
    $region48: #{my_network_forward.1} parent=5 // pred_fallthru
      _
    %p1069 = scmp.le.s32.totalorder 2, %s13
    // Predicated region
    $region53: #{my_network_forward.1} parent=5 // pred_check
      %p1070 = pneg %p1069
    $region54: #{my_network_forward.1} parent=5 // pred_check_branch
      %1072 = sbr.rel (%p1070) target = $region56
    $region55: #{my_network_forward.1} parent=5 // pred_region
      %s1073 = ssub.s32 %s13, 2
      // Predicated region
      $region57: #{my_network_forward.1} parent=55 // pred_check
        %p1074 = pneg %p194
      $region58: #{my_network_forward.1} parent=55 // pred_check_branch
        %1076 = sbr.rel (%p1074) target = $region60
      $region59: #{my_network_forward.1} parent=55 // pred_region
        %s1077 = smul.u32 16, %s19
        %p1078 = scmp.lt.s32.totalorder %s1077, 31
        %s1079 = scalar_select %p1078, %s1077, 31
        %s1080 = smul.addr %s1079, 8
        %s1081 = scalar_lea.vmem %s7, %s1080
      $region60: #{my_network_forward.1} parent=55 // pred_fallthru
        _
    $region56: #{my_network_forward.1} parent=5 // pred_fallthru
      _
  $region6: #{my_network_forward.1} parent=0 // loop_footer
    %s17 = sadd.s32 1, %s13
  $region7: #{my_network_forward.1} parent=0 // loop_footer_branch
    %12 = sbr.rel target = $region3
  $region8: #{my_network_forward.1} parent=0 // loop_exit
    _

</llo_original>
